<compile_context>
chip_gen: v5e
topology: v5e:2x2
jax: 0.10.0
libtpu: 0.0.40
codegen_flags: <defaults>
</compile_context>

<pallas_src>
import jax
import jax.numpy as jnp
from jax import lax
from jax.experimental import pallas as pl
from jax.experimental.pallas import tpu as pltpu


def _round_up(x, m):
    return ((x + m - 1) // m) * m


def _choose_block_b(b):
    """Returns (block_b, b_pad). block_b is either the full batch or a multiple of 8."""
    if b <= 8:
        return b, b                       # single block; no padding waste (shipped B=4 path)
    for cand in (32, 24, 16, 8):          # prefer >=2 parallel grid steps (v7x megacore)
        if b % cand == 0 and b // cand >= 2:
            return cand, b
    if b <= 16:
        return b, b                       # small odd batch: one full-dim block, zero waste
    return 8, _round_up(b, 8)             # large odd batch: pad a few rows (corrected exactly)


def _choose_tile_j(n_pad):
    """Largest power-of-two tile height in [8, 64] keeping a (tile_j, n_pad) f32 tile <= ~8 vregs."""
    cap = max(8, min(64, 8192 // n_pad))
    t = 8
    while t * 2 <= cap:
        t *= 2
    return t                              # always divides n_pad (n_pad is a multiple of 128)


def _make_kernel(block_b, n_pad, tile_j):
    n_tiles = n_pad // tile_j
    unroll = n_tiles <= 8                 # short fixed trip counts: give the LLO scheduler visibility

    def kernel(margin_ref, orow_ref, lrow_ref, ocol_ref, lcol_ref, psum_ref):
        # margin_ref: SMEM (1,) f32 (scalar prefetch).
        # orow/lrow:  VMEM (block_b, n_pad)   -- row (lane-varying) operand.
        # ocol/lcol:  VMEM (n_pad, block_b)   -- column (sublane-varying) operand; no transpose needed.
        # psum_ref:   VMEM (8, n_pad) lane-dense partial-sum output block for this batch block.
        margin = margin_ref[0]            # scalar; splats for free inside the VALU ops below

        acc = jnp.zeros((tile_j, n_pad), jnp.float32)

        for bb in range(block_b):         # static unroll over rows in the block (<= 32)
            # NOTE: a stride-0 sublane-broadcast read would pre-replicate the row across
            # tile_j sublanes, but tile_j > block_b makes that slice shape-unsafe; the
            # implicit (1,n)->(tile_j,n) broadcast inside the subtract is cheap anyway.
            o_row = orow_ref[bb:bb + 1, :].astype(jnp.float32)   # (1, n_pad)
            l_row = lrow_ref[bb:bb + 1, :].astype(jnp.float32)

            def tile_body(t, a):
                js = pl.multiple_of(t * tile_j, tile_j)
                o_col = ocol_ref[pl.ds(js, tile_j), bb:bb + 1].astype(jnp.float32)  # (tile_j, 1)
                l_col = lcol_ref[pl.ds(js, tile_j), bb:bb + 1].astype(jnp.float32)
                h = jnp.maximum(margin - (o_col - o_row) * (l_col - l_row), 0.0)    # (tile_j, n_pad)
                return a + h

            acc = lax.fori_loop(0, n_tiles, tile_body, acc, unroll=unroll)

        # Fold (tile_j, n_pad) -> (8, n_pad): a handful of vreg adds; store stays 1 vreg-row,
        # unmasked and lane-dense, and the follow-up jnp.sum touches 8x fewer elements.
        folded = acc[0:8, :]
        for r in range(1, tile_j // 8):
            folded = folded + acc[r * 8:(r + 1) * 8, :]
        psum_ref[...] = folded

    return kernel


@jax.jit
def pairwise_max_margin_hinge_loss(out, label, margin):
    """out, label: (N, B) arrays (layout the PyTorch module receives). Returns f32 scalar."""
    n, b = out.shape
    margin_f = jnp.asarray(margin, jnp.float32)

    n_pad = max(128, _round_up(n, 128))       # lane-dense everywhere; corrected exactly below
    block_b, b_pad = _choose_block_b(b)
    n_blocks = b_pad // block_b
    tile_j = _choose_tile_j(n_pad)

    # Row layout (B, N) for the lane-varying "k" operand; per-block column layout straight
    # from the original (N, B) array for the sublane-varying "j" operand.  Both built by
    # XLA here (fused under jit) so the kernel body needs zero relayouts.
    out_rows = jnp.pad(jnp.transpose(out), ((0, b_pad - b), (0, n_pad - n)))
    lab_rows = jnp.pad(jnp.transpose(label), ((0, b_pad - b), (0, n_pad - n)))
    out_cols = jnp.transpose(
        jnp.pad(out, ((0, n_pad - n), (0, b_pad - b))).reshape(n_pad, n_blocks, block_b),
        (1, 0, 2))                             # (n_blocks, n_pad, block_b)
    lab_cols = jnp.transpose(
        jnp.pad(label, ((0, n_pad - n), (0, b_pad - b))).reshape(n_pad, n_blocks, block_b),
        (1, 0, 2))

    psum = pl.pallas_call(
        _make_kernel(block_b, n_pad, tile_j),
        out_shape=jax.ShapeDtypeStruct((n_blocks * 8, n_pad), jnp.float32),
        grid_spec=pltpu.PrefetchScalarGridSpec(
            num_scalar_prefetch=1,                 # margin -> SMEM
            grid=(n_blocks,),
            in_specs=[
                pl.BlockSpec((block_b, n_pad), lambda i, m: (i, 0)),          # out rows
                pl.BlockSpec((block_b, n_pad), lambda i, m: (i, 0)),          # label rows
                pl.BlockSpec((None, n_pad, block_b), lambda i, m: (i, 0, 0)),  # out cols
                pl.BlockSpec((None, n_pad, block_b), lambda i, m: (i, 0, 0)),  # label cols
            ],
            out_specs=pl.BlockSpec((8, n_pad), lambda i, m: (i, 0)),          # per-block partial sums
        ),
        compiler_params=pltpu.CompilerParams(
            dimension_semantics=("parallel",)),    # independent per-block outputs (v7x megacore)
    )(margin_f.reshape(1), out_rows, lab_rows, out_cols, lab_cols)

    loss = jnp.sum(psum)

    # Exact zero-padding corrections (computed on the TRUE data; fused under jit, O(B*N)).
    relu_m = jnp.maximum(margin_f, 0.0)
    col_pad = n_pad - n
    row_pad = b_pad - b
    if col_pad:
        ol = jnp.transpose(out).astype(jnp.float32) * jnp.transpose(label).astype(jnp.float32)
        loss = loss - 2.0 * col_pad * jnp.sum(jnp.maximum(margin_f - ol, 0.0)) \
                    - b * (col_pad * col_pad) * relu_m
    if row_pad:
        loss = loss - row_pad * (n_pad * n_pad) * relu_m
    return loss


def _reference(out, label, margin):
    o = jnp.transpose(out).astype(jnp.float32)    # (B, N)
    l = jnp.transpose(label).astype(jnp.float32)
    t1 = o[:, :, None] - o[:, None, :]
    t2 = l[:, :, None] - l[:, None, :]
    return jnp.sum(jnp.maximum(jnp.float32(margin) - t1 * t2, 0.0))


if __name__ == "__main__":
    key = jax.random.PRNGKey(0)
    k1, k2, k3, k4 = jax.random.split(key, 4)

    # Module inputs: out/label of shape (N, batch_size); margin is a runtime scalar.
    N, B = 128, 4
    out = jax.random.normal(k1, (N, B), dtype=jnp.float32)
    label = (jax.random.uniform(k2, (N, B)) > 0.5).astype(jnp.float32)
    margin = 1.0

    loss = pairwise_max_margin_hinge_loss(out, label, margin)
    jax.block_until_ready(loss)
    ref = _reference(out, label, margin)
    assert jnp.allclose(loss, ref, rtol=1e-4, atol=1e-2), (float(loss), float(ref))

    # Ragged shape exercising the N/B zero-padding + analytic-correction path.
    N2, B2 = 100, 6
    out2 = jax.random.normal(k3, (N2, B2), dtype=jnp.float32)
    label2 = (jax.random.uniform(k4, (N2, B2)) > 0.5).astype(jnp.float32)
    loss2 = pairwise_max_margin_hinge_loss(out2, label2, 0.7)
    jax.block_until_ready(loss2)
    ref2 = _reference(out2, label2, 0.7)
    assert jnp.allclose(loss2, ref2, rtol=1e-4, atol=5e-2), (float(loss2), float(ref2))

    print("KERNEL_OK")
</pallas_src>

<mosaic_0001>
module attributes {stable_mosaic.version = 11 : i64} {
  func.func @kernel(%arg0: i32, %arg1: memref<1xf32, #tpu.memory_space<smem>>, %arg2: memref<4x128xf32, #tpu.memory_space<vmem>>, %arg3: memref<4x128xf32, #tpu.memory_space<vmem>>, %arg4: memref<1x128x4xf32, #tpu.memory_space<vmem>>, %arg5: memref<1x128x4xf32, #tpu.memory_space<vmem>>, %arg6: memref<8x128xf32, #tpu.memory_space<vmem>>) attributes {dimension_semantics = [#tpu.dimension_semantics<parallel>], iteration_bounds = array<i64: 1>, scalar_prefetch = 1 : i64, scratch_operands = 0 : i64, tpu.core_type = #tpu.core_type<tc>, window_params = [{transform_indices = @transform_0, window_bounds = array<i64: 4, 128>}, {transform_indices = @transform_1, window_bounds = array<i64: 4, 128>}, {transform_indices = @transform_2, window_bounds = array<i64: 1, 128, 4>}, {transform_indices = @transform_3, window_bounds = array<i64: 1, 128, 4>}, {transform_indices = @transform_4, window_bounds = array<i64: 8, 128>}]} {
    %c0 = arith.constant 0 : index
    %0 = memref.load %arg1[%c0] : memref<1xf32, #tpu.memory_space<smem>>
    %cst = arith.constant 0.000000e+00 : f32
    %1 = vector.broadcast %cst : f32 to vector<64x128xf32>
    %c0_0 = arith.constant 0 : index
    %c0_1 = arith.constant 0 : index
    %2 = vector.load %arg2[%c0_0, %c0_1] : memref<4x128xf32, #tpu.memory_space<vmem>>, vector<1x128xf32>
    %c0_2 = arith.constant 0 : index
    %c0_3 = arith.constant 0 : index
    %3 = vector.load %arg3[%c0_2, %c0_3] : memref<4x128xf32, #tpu.memory_space<vmem>>, vector<1x128xf32>
    %c0_i32 = arith.constant 0 : i32
    %c64_i32 = arith.constant 64 : i32
    %4 = arith.muli %c0_i32, %c64_i32 : i32
    %5 = tpu.assume_multiple %4, 64 : i32
    %c0_4 = arith.constant 0 : index
    %6 = arith.index_cast %5 : i32 to index
    %c0_5 = arith.constant 0 : index
    %7 = vector.load %arg4[%c0_4, %6, %c0_5] : memref<1x128x4xf32, #tpu.memory_space<vmem>>, vector<1x64x1xf32>
    %8 = vector.shape_cast %7 : vector<1x64x1xf32> to vector<64x1xf32>
    %c0_6 = arith.constant 0 : index
    %9 = arith.index_cast %5 : i32 to index
    %c0_7 = arith.constant 0 : index
    %10 = vector.load %arg5[%c0_6, %9, %c0_7] : memref<1x128x4xf32, #tpu.memory_space<vmem>>, vector<1x64x1xf32>
    %11 = vector.shape_cast %10 : vector<1x64x1xf32> to vector<64x1xf32>
    %12 = vector.broadcast %8 : vector<64x1xf32> to vector<64x128xf32>
    %13 = vector.broadcast %2 : vector<1x128xf32> to vector<64x128xf32>
    %14 = arith.subf %12, %13 : vector<64x128xf32>
    %15 = vector.broadcast %11 : vector<64x1xf32> to vector<64x128xf32>
    %16 = vector.broadcast %3 : vector<1x128xf32> to vector<64x128xf32>
    %17 = arith.subf %15, %16 : vector<64x128xf32>
    %18 = arith.mulf %14, %17 : vector<64x128xf32>
    %19 = vector.broadcast %0 : f32 to vector<64x128xf32>
    %20 = arith.subf %19, %18 : vector<64x128xf32>
    %cst_8 = arith.constant 0.000000e+00 : f32
    %21 = vector.broadcast %cst_8 : f32 to vector<64x128xf32>
    %22 = arith.maximumf %20, %21 : vector<64x128xf32>
    %23 = arith.addf %1, %22 : vector<64x128xf32>
    %c1_i32 = arith.constant 1 : i32
    %c64_i32_9 = arith.constant 64 : i32
    %24 = arith.muli %c1_i32, %c64_i32_9 : i32
    %25 = tpu.assume_multiple %24, 64 : i32
    %c0_10 = arith.constant 0 : index
    %26 = arith.index_cast %25 : i32 to index
    %c0_11 = arith.constant 0 : index
    %27 = vector.load %arg4[%c0_10, %26, %c0_11] : memref<1x128x4xf32, #tpu.memory_space<vmem>>, vector<1x64x1xf32>
    %28 = vector.shape_cast %27 : vector<1x64x1xf32> to vector<64x1xf32>
    %c0_12 = arith.constant 0 : index
    %29 = arith.index_cast %25 : i32 to index
    %c0_13 = arith.constant 0 : index
    %30 = vector.load %arg5[%c0_12, %29, %c0_13] : memref<1x128x4xf32, #tpu.memory_space<vmem>>, vector<1x64x1xf32>
    %31 = vector.shape_cast %30 : vector<1x64x1xf32> to vector<64x1xf32>
    %32 = vector.broadcast %28 : vector<64x1xf32> to vector<64x128xf32>
    %33 = vector.broadcast %2 : vector<1x128xf32> to vector<64x128xf32>
    %34 = arith.subf %32, %33 : vector<64x128xf32>
    %35 = vector.broadcast %31 : vector<64x1xf32> to vector<64x128xf32>
    %36 = vector.broadcast %3 : vector<1x128xf32> to vector<64x128xf32>
    %37 = arith.subf %35, %36 : vector<64x128xf32>
    %38 = arith.mulf %34, %37 : vector<64x128xf32>
    %39 = vector.broadcast %0 : f32 to vector<64x128xf32>
    %40 = arith.subf %39, %38 : vector<64x128xf32>
    %cst_14 = arith.constant 0.000000e+00 : f32
    %41 = vector.broadcast %cst_14 : f32 to vector<64x128xf32>
    %42 = arith.maximumf %40, %41 : vector<64x128xf32>
    %43 = arith.addf %23, %42 : vector<64x128xf32>
    %c2_i32 = arith.constant 2 : i32
    %c1 = arith.constant 1 : index
    %c0_15 = arith.constant 0 : index
    %44 = vector.load %arg2[%c1, %c0_15] : memref<4x128xf32, #tpu.memory_space<vmem>>, vector<1x128xf32>
    %c1_16 = arith.constant 1 : index
    %c0_17 = arith.constant 0 : index
    %45 = vector.load %arg3[%c1_16, %c0_17] : memref<4x128xf32, #tpu.memory_space<vmem>>, vector<1x128xf32>
    %c0_i32_18 = arith.constant 0 : i32
    %c64_i32_19 = arith.constant 64 : i32
    %46 = arith.muli %c0_i32_18, %c64_i32_19 : i32
    %47 = tpu.assume_multiple %46, 64 : i32
    %c0_20 = arith.constant 0 : index
    %48 = arith.index_cast %47 : i32 to index
    %c1_21 = arith.constant 1 : index
    %49 = vector.load %arg4[%c0_20, %48, %c1_21] : memref<1x128x4xf32, #tpu.memory_space<vmem>>, vector<1x64x1xf32>
    %50 = vector.shape_cast %49 : vector<1x64x1xf32> to vector<64x1xf32>
    %c0_22 = arith.constant 0 : index
    %51 = arith.index_cast %47 : i32 to index
    %c1_23 = arith.constant 1 : index
    %52 = vector.load %arg5[%c0_22, %51, %c1_23] : memref<1x128x4xf32, #tpu.memory_space<vmem>>, vector<1x64x1xf32>
    %53 = vector.shape_cast %52 : vector<1x64x1xf32> to vector<64x1xf32>
    %54 = vector.broadcast %50 : vector<64x1xf32> to vector<64x128xf32>
    %55 = vector.broadcast %44 : vector<1x128xf32> to vector<64x128xf32>
    %56 = arith.subf %54, %55 : vector<64x128xf32>
    %57 = vector.broadcast %53 : vector<64x1xf32> to vector<64x128xf32>
    %58 = vector.broadcast %45 : vector<1x128xf32> to vector<64x128xf32>
    %59 = arith.subf %57, %58 : vector<64x128xf32>
    %60 = arith.mulf %56, %59 : vector<64x128xf32>
    %61 = vector.broadcast %0 : f32 to vector<64x128xf32>
    %62 = arith.subf %61, %60 : vector<64x128xf32>
    %cst_24 = arith.constant 0.000000e+00 : f32
    %63 = vector.broadcast %cst_24 : f32 to vector<64x128xf32>
    %64 = arith.maximumf %62, %63 : vector<64x128xf32>
    %65 = arith.addf %43, %64 : vector<64x128xf32>
    %c1_i32_25 = arith.constant 1 : i32
    %c64_i32_26 = arith.constant 64 : i32
    %66 = arith.muli %c1_i32_25, %c64_i32_26 : i32
    %67 = tpu.assume_multiple %66, 64 : i32
    %c0_27 = arith.constant 0 : index
    %68 = arith.index_cast %67 : i32 to index
    %c1_28 = arith.constant 1 : index
    %69 = vector.load %arg4[%c0_27, %68, %c1_28] : memref<1x128x4xf32, #tpu.memory_space<vmem>>, vector<1x64x1xf32>
    %70 = vector.shape_cast %69 : vector<1x64x1xf32> to vector<64x1xf32>
    %c0_29 = arith.constant 0 : index
    %71 = arith.index_cast %67 : i32 to index
    %c1_30 = arith.constant 1 : index
    %72 = vector.load %arg5[%c0_29, %71, %c1_30] : memref<1x128x4xf32, #tpu.memory_space<vmem>>, vector<1x64x1xf32>
    %73 = vector.shape_cast %72 : vector<1x64x1xf32> to vector<64x1xf32>
    %74 = vector.broadcast %70 : vector<64x1xf32> to vector<64x128xf32>
    %75 = vector.broadcast %44 : vector<1x128xf32> to vector<64x128xf32>
    %76 = arith.subf %74, %75 : vector<64x128xf32>
    %77 = vector.broadcast %73 : vector<64x1xf32> to vector<64x128xf32>
    %78 = vector.broadcast %45 : vector<1x128xf32> to vector<64x128xf32>
    %79 = arith.subf %77, %78 : vector<64x128xf32>
    %80 = arith.mulf %76, %79 : vector<64x128xf32>
    %81 = vector.broadcast %0 : f32 to vector<64x128xf32>
    %82 = arith.subf %81, %80 : vector<64x128xf32>
    %cst_31 = arith.constant 0.000000e+00 : f32
    %83 = vector.broadcast %cst_31 : f32 to vector<64x128xf32>
    %84 = arith.maximumf %82, %83 : vector<64x128xf32>
    %85 = arith.addf %65, %84 : vector<64x128xf32>
    %c2_i32_32 = arith.constant 2 : i32
    %c2 = arith.constant 2 : index
    %c0_33 = arith.constant 0 : index
    %86 = vector.load %arg2[%c2, %c0_33] : memref<4x128xf32, #tpu.memory_space<vmem>>, vector<1x128xf32>
    %c2_34 = arith.constant 2 : index
    %c0_35 = arith.constant 0 : index
    %87 = vector.load %arg3[%c2_34, %c0_35] : memref<4x128xf32, #tpu.memory_space<vmem>>, vector<1x128xf32>
    %c0_i32_36 = arith.constant 0 : i32
    %c64_i32_37 = arith.constant 64 : i32
    %88 = arith.muli %c0_i32_36, %c64_i32_37 : i32
    %89 = tpu.assume_multiple %88, 64 : i32
    %c0_38 = arith.constant 0 : index
    %90 = arith.index_cast %89 : i32 to index
    %c2_39 = arith.constant 2 : index
    %91 = vector.load %arg4[%c0_38, %90, %c2_39] : memref<1x128x4xf32, #tpu.memory_space<vmem>>, vector<1x64x1xf32>
    %92 = vector.shape_cast %91 : vector<1x64x1xf32> to vector<64x1xf32>
    %c0_40 = arith.constant 0 : index
    %93 = arith.index_cast %89 : i32 to index
    %c2_41 = arith.constant 2 : index
    %94 = vector.load %arg5[%c0_40, %93, %c2_41] : memref<1x128x4xf32, #tpu.memory_space<vmem>>, vector<1x64x1xf32>
    %95 = vector.shape_cast %94 : vector<1x64x1xf32> to vector<64x1xf32>
    %96 = vector.broadcast %92 : vector<64x1xf32> to vector<64x128xf32>
    %97 = vector.broadcast %86 : vector<1x128xf32> to vector<64x128xf32>
    %98 = arith.subf %96, %97 : vector<64x128xf32>
    %99 = vector.broadcast %95 : vector<64x1xf32> to vector<64x128xf32>
    %100 = vector.broadcast %87 : vector<1x128xf32> to vector<64x128xf32>
    %101 = arith.subf %99, %100 : vector<64x128xf32>
    %102 = arith.mulf %98, %101 : vector<64x128xf32>
    %103 = vector.broadcast %0 : f32 to vector<64x128xf32>
    %104 = arith.subf %103, %102 : vector<64x128xf32>
    %cst_42 = arith.constant 0.000000e+00 : f32
    %105 = vector.broadcast %cst_42 : f32 to vector<64x128xf32>
    %106 = arith.maximumf %104, %105 : vector<64x128xf32>
    %107 = arith.addf %85, %106 : vector<64x128xf32>
    %c1_i32_43 = arith.constant 1 : i32
    %c64_i32_44 = arith.constant 64 : i32
    %108 = arith.muli %c1_i32_43, %c64_i32_44 : i32
    %109 = tpu.assume_multiple %108, 64 : i32
    %c0_45 = arith.constant 0 : index
    %110 = arith.index_cast %109 : i32 to index
    %c2_46 = arith.constant 2 : index
    %111 = vector.load %arg4[%c0_45, %110, %c2_46] : memref<1x128x4xf32, #tpu.memory_space<vmem>>, vector<1x64x1xf32>
    %112 = vector.shape_cast %111 : vector<1x64x1xf32> to vector<64x1xf32>
    %c0_47 = arith.constant 0 : index
    %113 = arith.index_cast %109 : i32 to index
    %c2_48 = arith.constant 2 : index
    %114 = vector.load %arg5[%c0_47, %113, %c2_48] : memref<1x128x4xf32, #tpu.memory_space<vmem>>, vector<1x64x1xf32>
    %115 = vector.shape_cast %114 : vector<1x64x1xf32> to vector<64x1xf32>
    %116 = vector.broadcast %112 : vector<64x1xf32> to vector<64x128xf32>
    %117 = vector.broadcast %86 : vector<1x128xf32> to vector<64x128xf32>
    %118 = arith.subf %116, %117 : vector<64x128xf32>
    %119 = vector.broadcast %115 : vector<64x1xf32> to vector<64x128xf32>
    %120 = vector.broadcast %87 : vector<1x128xf32> to vector<64x128xf32>
    %121 = arith.subf %119, %120 : vector<64x128xf32>
    %122 = arith.mulf %118, %121 : vector<64x128xf32>
    %123 = vector.broadcast %0 : f32 to vector<64x128xf32>
    %124 = arith.subf %123, %122 : vector<64x128xf32>
    %cst_49 = arith.constant 0.000000e+00 : f32
    %125 = vector.broadcast %cst_49 : f32 to vector<64x128xf32>
    %126 = arith.maximumf %124, %125 : vector<64x128xf32>
    %127 = arith.addf %107, %126 : vector<64x128xf32>
    %c2_i32_50 = arith.constant 2 : i32
    %c3 = arith.constant 3 : index
    %c0_51 = arith.constant 0 : index
    %128 = vector.load %arg2[%c3, %c0_51] : memref<4x128xf32, #tpu.memory_space<vmem>>, vector<1x128xf32>
    %c3_52 = arith.constant 3 : index
    %c0_53 = arith.constant 0 : index
    %129 = vector.load %arg3[%c3_52, %c0_53] : memref<4x128xf32, #tpu.memory_space<vmem>>, vector<1x128xf32>
    %c0_i32_54 = arith.constant 0 : i32
    %c64_i32_55 = arith.constant 64 : i32
    %130 = arith.muli %c0_i32_54, %c64_i32_55 : i32
    %131 = tpu.assume_multiple %130, 64 : i32
    %c0_56 = arith.constant 0 : index
    %132 = arith.index_cast %131 : i32 to index
    %c3_57 = arith.constant 3 : index
    %133 = vector.load %arg4[%c0_56, %132, %c3_57] : memref<1x128x4xf32, #tpu.memory_space<vmem>>, vector<1x64x1xf32>
    %134 = vector.shape_cast %133 : vector<1x64x1xf32> to vector<64x1xf32>
    %c0_58 = arith.constant 0 : index
    %135 = arith.index_cast %131 : i32 to index
    %c3_59 = arith.constant 3 : index
    %136 = vector.load %arg5[%c0_58, %135, %c3_59] : memref<1x128x4xf32, #tpu.memory_space<vmem>>, vector<1x64x1xf32>
    %137 = vector.shape_cast %136 : vector<1x64x1xf32> to vector<64x1xf32>
    %138 = vector.broadcast %134 : vector<64x1xf32> to vector<64x128xf32>
    %139 = vector.broadcast %128 : vector<1x128xf32> to vector<64x128xf32>
    %140 = arith.subf %138, %139 : vector<64x128xf32>
    %141 = vector.broadcast %137 : vector<64x1xf32> to vector<64x128xf32>
    %142 = vector.broadcast %129 : vector<1x128xf32> to vector<64x128xf32>
    %143 = arith.subf %141, %142 : vector<64x128xf32>
    %144 = arith.mulf %140, %143 : vector<64x128xf32>
    %145 = vector.broadcast %0 : f32 to vector<64x128xf32>
    %146 = arith.subf %145, %144 : vector<64x128xf32>
    %cst_60 = arith.constant 0.000000e+00 : f32
    %147 = vector.broadcast %cst_60 : f32 to vector<64x128xf32>
    %148 = arith.maximumf %146, %147 : vector<64x128xf32>
    %149 = arith.addf %127, %148 : vector<64x128xf32>
    %c1_i32_61 = arith.constant 1 : i32
    %c64_i32_62 = arith.constant 64 : i32
    %150 = arith.muli %c1_i32_61, %c64_i32_62 : i32
    %151 = tpu.assume_multiple %150, 64 : i32
    %c0_63 = arith.constant 0 : index
    %152 = arith.index_cast %151 : i32 to index
    %c3_64 = arith.constant 3 : index
    %153 = vector.load %arg4[%c0_63, %152, %c3_64] : memref<1x128x4xf32, #tpu.memory_space<vmem>>, vector<1x64x1xf32>
    %154 = vector.shape_cast %153 : vector<1x64x1xf32> to vector<64x1xf32>
    %c0_65 = arith.constant 0 : index
    %155 = arith.index_cast %151 : i32 to index
    %c3_66 = arith.constant 3 : index
    %156 = vector.load %arg5[%c0_65, %155, %c3_66] : memref<1x128x4xf32, #tpu.memory_space<vmem>>, vector<1x64x1xf32>
    %157 = vector.shape_cast %156 : vector<1x64x1xf32> to vector<64x1xf32>
    %158 = vector.broadcast %154 : vector<64x1xf32> to vector<64x128xf32>
    %159 = vector.broadcast %128 : vector<1x128xf32> to vector<64x128xf32>
    %160 = arith.subf %158, %159 : vector<64x128xf32>
    %161 = vector.broadcast %157 : vector<64x1xf32> to vector<64x128xf32>
    %162 = vector.broadcast %129 : vector<1x128xf32> to vector<64x128xf32>
    %163 = arith.subf %161, %162 : vector<64x128xf32>
    %164 = arith.mulf %160, %163 : vector<64x128xf32>
    %165 = vector.broadcast %0 : f32 to vector<64x128xf32>
    %166 = arith.subf %165, %164 : vector<64x128xf32>
    %cst_67 = arith.constant 0.000000e+00 : f32
    %167 = vector.broadcast %cst_67 : f32 to vector<64x128xf32>
    %168 = arith.maximumf %166, %167 : vector<64x128xf32>
    %169 = arith.addf %149, %168 : vector<64x128xf32>
    %c2_i32_68 = arith.constant 2 : i32
    %170 = vector.extract_strided_slice %169 {offsets = [0, 0], sizes = [8, 128], strides = [1, 1]} : vector<64x128xf32> to vector<8x128xf32>
    %171 = vector.extract_strided_slice %169 {offsets = [8, 0], sizes = [8, 128], strides = [1, 1]} : vector<64x128xf32> to vector<8x128xf32>
    %172 = arith.addf %170, %171 : vector<8x128xf32>
    %173 = vector.extract_strided_slice %169 {offsets = [16, 0], sizes = [8, 128], strides = [1, 1]} : vector<64x128xf32> to vector<8x128xf32>
    %174 = arith.addf %172, %173 : vector<8x128xf32>
    %175 = vector.extract_strided_slice %169 {offsets = [24, 0], sizes = [8, 128], strides = [1, 1]} : vector<64x128xf32> to vector<8x128xf32>
    %176 = arith.addf %174, %175 : vector<8x128xf32>
    %177 = vector.extract_strided_slice %169 {offsets = [32, 0], sizes = [8, 128], strides = [1, 1]} : vector<64x128xf32> to vector<8x128xf32>
    %178 = arith.addf %176, %177 : vector<8x128xf32>
    %179 = vector.extract_strided_slice %169 {offsets = [40, 0], sizes = [8, 128], strides = [1, 1]} : vector<64x128xf32> to vector<8x128xf32>
    %180 = arith.addf %178, %179 : vector<8x128xf32>
    %181 = vector.extract_strided_slice %169 {offsets = [48, 0], sizes = [8, 128], strides = [1, 1]} : vector<64x128xf32> to vector<8x128xf32>
    %182 = arith.addf %180, %181 : vector<8x128xf32>
    %183 = vector.extract_strided_slice %169 {offsets = [56, 0], sizes = [8, 128], strides = [1, 1]} : vector<64x128xf32> to vector<8x128xf32>
    %184 = arith.addf %182, %183 : vector<8x128xf32>
    %c0_69 = arith.constant 0 : index
    %c0_70 = arith.constant 0 : index
    %185 = vector.load %arg6[%c0_69, %c0_70] : memref<8x128xf32, #tpu.memory_space<vmem>>, vector<8x128xf32>
    tpu.vector_store %arg6[%c0_69, %c0_70], %184 {strides = array<i32>} : memref<8x128xf32, #tpu.memory_space<vmem>>, vector<8x128xf32>,
    return
  }
  func.func @transform_0(%arg0: i32, %arg1: memref<1xf32, #tpu.memory_space<smem>>) -> (i32, i32) {
    %c0_i32 = arith.constant 0 : i32
    %c0_i32_0 = arith.constant 0 : i32
    return %arg0, %c0_i32 : i32, i32
  }
  func.func @transform_1(%arg0: i32, %arg1: memref<1xf32, #tpu.memory_space<smem>>) -> (i32, i32) {
    %c0_i32 = arith.constant 0 : i32
    %c0_i32_0 = arith.constant 0 : i32
    return %arg0, %c0_i32 : i32, i32
  }
  func.func @transform_2(%arg0: i32, %arg1: memref<1xf32, #tpu.memory_space<smem>>) -> (i32, i32, i32) {
    %c0_i32 = arith.constant 0 : i32
    %c0_i32_0 = arith.constant 0 : i32
    %c0_i32_1 = arith.constant 0 : i32
    return %arg0, %c0_i32, %c0_i32_0 : i32, i32, i32
  }
  func.func @transform_3(%arg0: i32, %arg1: memref<1xf32, #tpu.memory_space<smem>>) -> (i32, i32, i32) {
    %c0_i32 = arith.constant 0 : i32
    %c0_i32_0 = arith.constant 0 : i32
    %c0_i32_1 = arith.constant 0 : i32
    return %arg0, %c0_i32, %c0_i32_0 : i32, i32, i32
  }
  func.func @transform_4(%arg0: i32, %arg1: memref<1xf32, #tpu.memory_space<smem>>) -> (i32, i32) {
    %c0_i32 = arith.constant 0 : i32
    %c0_i32_0 = arith.constant 0 : i32
    return %arg0, %c0_i32 : i32, i32
  }
}

</mosaic_0001>

<llo_original>
// kernel: pairwise_max_margin_hinge_loss.1
$region0: #{pairwise_max_margin_hinge_loss.1}
  #allocation0 [shape = 'u32[]', space=smem, size = 0x4, offset = 0x4, fixed_abs, tag = 'smem constant byte address 0x4 - core index']
  #allocation1 [shape = 'u32[72,128]{1,0:T(1,128)}', space=vmem, size = 0x9000, scoped, tag = 'internal scratch']
  #allocation2 [shape = 's32[1]{0}', space=sflag, size = 0x4, scoped, tag = 'scoped memory for pairwise_max_margin_hinge_loss.1']
  #allocation3 [shape = 'f32[1]{0:T(128)S(6)}', space=smem, size = 0x200, scoped, tag = 'prefetched SMEM operand 0']
  %s0 = inlined_call_operand.<no memory space> [shape: f32[1], index: 0, kind: input, shape index: {}]
  %s1 = inlined_call_operand.vmem [shape: f32[4,128], index: 1, kind: input, shape index: {}]
  %s2 = inlined_call_operand.vmem [shape: f32[4,128], index: 2, kind: input, shape index: {}]
  %s3 = inlined_call_operand.vmem [shape: f32[1,128,4], index: 3, kind: input, shape index: {}]
  %s4 = inlined_call_operand.vmem [shape: f32[1,128,4], index: 4, kind: input, shape index: {}]
  %s5 = inlined_call_operand.vmem [shape: f32[8,128], index: 5, kind: output, shape index: {}]
  %s6 = sld [smem:[#allocation0]]
  $region26: #{pairwise_max_margin_hinge_loss.1} parent=0
    _
  %s8 = ssub.s32 1, %s6
  %s9 = scalar_select 0, %s8, %s6
  %10 = sst [smem:[#allocation3]] %s0
  // Predicated region
  $region2: #{pairwise_max_margin_hinge_loss.1} parent=0 // pred_check
    _
  $region3: #{pairwise_max_margin_hinge_loss.1} parent=0 // pred_check_branch
    %12 = sbr.rel (0) target = $region5
  $region4: #{pairwise_max_margin_hinge_loss.1} parent=0 // pred_region
    _
  $region5: #{pairwise_max_margin_hinge_loss.1} parent=0 // pred_fallthru
    _
  // Predicated region
  $region6: #{pairwise_max_margin_hinge_loss.1} parent=0 // pred_check
    _
  $region7: #{pairwise_max_margin_hinge_loss.1} parent=0 // pred_check_branch
    %14 = sbr.rel (0) target = $region9
  $region8: #{pairwise_max_margin_hinge_loss.1} parent=0 // pred_region
    _
  $region9: #{pairwise_max_margin_hinge_loss.1} parent=0 // pred_fallthru
    _
  // Predicated region
  $region10: #{pairwise_max_margin_hinge_loss.1} parent=0 // pred_check
    _
  $region11: #{pairwise_max_margin_hinge_loss.1} parent=0 // pred_check_branch
    %16 = sbr.rel (0) target = $region13
  $region12: #{pairwise_max_margin_hinge_loss.1} parent=0 // pred_region
    _
  $region13: #{pairwise_max_margin_hinge_loss.1} parent=0 // pred_fallthru
    _
  // Predicated region
  $region14: #{pairwise_max_margin_hinge_loss.1} parent=0 // pred_check
    _
  $region15: #{pairwise_max_margin_hinge_loss.1} parent=0 // pred_check_branch
    %18 = sbr.rel (0) target = $region17
  $region16: #{pairwise_max_margin_hinge_loss.1} parent=0 // pred_region
    _
  $region17: #{pairwise_max_margin_hinge_loss.1} parent=0 // pred_fallthru
    _
  %s19 = sld [smem:[#allocation3]]
  %v20 = vld [vmem:[%s1] sm:$0x1]
  %v21 = vld [vmem:[%s2] sm:$0x1]
  %v22 = vld [vmem:[%s3] sm:$0xff]
  %v23 = vld [vmem:[%s3 + $0x8] sm:$0xff]
  %v24 = vld [vmem:[%s3 + $0x10] sm:$0xff]
  %v25 = vld [vmem:[%s3 + $0x18] sm:$0xff]
  %v26 = vld [vmem:[%s3 + $0x20] sm:$0xff]
  %v27 = vld [vmem:[%s3 + $0x28] sm:$0xff]
  %v28 = vld [vmem:[%s3 + $0x30] sm:$0xff]
  %v29 = vld [vmem:[%s3 + $0x38] sm:$0xff]
  %v30 = vld [vmem:[%s4] sm:$0xff]
  %v31 = vld [vmem:[%s4 + $0x8] sm:$0xff]
  %v32 = vld [vmem:[%s4 + $0x10] sm:$0xff]
  %v33 = vld [vmem:[%s4 + $0x18] sm:$0xff]
  %v34 = vld [vmem:[%s4 + $0x20] sm:$0xff]
  %v35 = vld [vmem:[%s4 + $0x28] sm:$0xff]
  %v36 = vld [vmem:[%s4 + $0x30] sm:$0xff]
  %v37 = vld [vmem:[%s4 + $0x38] sm:$0xff]
  %39 = vset.pattern.permute.xlu0 0
  %40 = vperm.xlu0 %39, %v22
  %v41 = vpop.permute.xlu0 %40
  %44 = vset.pattern.permute.xlu0 0
  %45 = vperm.xlu0 %44, %v23
  %v46 = vpop.permute.xlu0 %45
  %49 = vset.pattern.permute.xlu0 0
  %50 = vperm.xlu0 %49, %v24
  %v51 = vpop.permute.xlu0 %50
  %54 = vset.pattern.permute.xlu0 0
  %55 = vperm.xlu0 %54, %v25
  %v56 = vpop.permute.xlu0 %55
  %59 = vset.pattern.permute.xlu0 0
  %60 = vperm.xlu0 %59, %v26
  %v61 = vpop.permute.xlu0 %60
  %64 = vset.pattern.permute.xlu0 0
  %65 = vperm.xlu0 %64, %v27
  %v66 = vpop.permute.xlu0 %65
  %69 = vset.pattern.permute.xlu0 0
  %70 = vperm.xlu0 %69, %v28
  %v71 = vpop.permute.xlu0 %70
  %74 = vset.pattern.permute.xlu0 0
  %75 = vperm.xlu0 %74, %v29
  %v76 = vpop.permute.xlu0 %75
  %v78 = vperm.slane %v20, 0
  %v79 = vsub.f32 %v41, %v78
  %v80 = vsub.f32 %v46, %v78
  %v81 = vsub.f32 %v51, %v78
  %v82 = vsub.f32 %v56, %v78
  %v83 = vsub.f32 %v61, %v78
  %v84 = vsub.f32 %v66, %v78
  %v85 = vsub.f32 %v71, %v78
  %v86 = vsub.f32 %v76, %v78
  %88 = vset.pattern.permute.xlu0 0
  %89 = vperm.xlu0 %88, %v30
  %v90 = vpop.permute.xlu0 %89
  %93 = vset.pattern.permute.xlu0 0
  %94 = vperm.xlu0 %93, %v31
  %v95 = vpop.permute.xlu0 %94
  %98 = vset.pattern.permute.xlu0 0
  %99 = vperm.xlu0 %98, %v32
  %v100 = vpop.permute.xlu0 %99
  %103 = vset.pattern.permute.xlu0 0
  %104 = vperm.xlu0 %103, %v33
  %v105 = vpop.permute.xlu0 %104
  %108 = vset.pattern.permute.xlu0 0
  %109 = vperm.xlu0 %108, %v34
  %v110 = vpop.permute.xlu0 %109
  %113 = vset.pattern.permute.xlu0 0
  %114 = vperm.xlu0 %113, %v35
  %v115 = vpop.permute.xlu0 %114
  %118 = vset.pattern.permute.xlu0 0
  %119 = vperm.xlu0 %118, %v36
  %v120 = vpop.permute.xlu0 %119
  %123 = vset.pattern.permute.xlu0 0
  %124 = vperm.xlu0 %123, %v37
  %v125 = vpop.permute.xlu0 %124
  %v127 = vperm.slane %v21, 0
  %v128 = vsub.f32 %v90, %v127
  %v129 = vsub.f32 %v95, %v127
  %v130 = vsub.f32 %v100, %v127
  %v131 = vsub.f32 %v105, %v127
  %v132 = vsub.f32 %v110, %v127
  %v133 = vsub.f32 %v115, %v127
  %v134 = vsub.f32 %v120, %v127
  %v135 = vsub.f32 %v125, %v127
  %v136 = vmul.f32 %v79, %v128
  %v137 = vmul.f32 %v80, %v129
  %v138 = vmul.f32 %v81, %v130
  %v139 = vmul.f32 %v82, %v131
  %v140 = vmul.f32 %v83, %v132
  %v141 = vmul.f32 %v84, %v133
  %v142 = vmul.f32 %v85, %v134
  %v143 = vmul.f32 %v86, %v135
  %v144 = vstv %s19
  %v145 = vsub.f32 %v144, %v136
  %v146 = vsub.f32 %v144, %v137
  %v147 = vsub.f32 %v144, %v138
  %v148 = vsub.f32 %v144, %v139
  %v149 = vsub.f32 %v144, %v140
  %v150 = vsub.f32 %v144, %v141
  %v151 = vsub.f32 %v144, %v142
  %v152 = vsub.f32 %v144, %v143
  %v153 = vmax.f32 %v145, 0.0
  %v154 = vmax.f32 %v146, 0.0
  %v155 = vmax.f32 %v147, 0.0
  %v156 = vmax.f32 %v148, 0.0
  %v157 = vmax.f32 %v149, 0.0
  %v158 = vmax.f32 %v150, 0.0
  %v159 = vmax.f32 %v151, 0.0
  %v160 = vmax.f32 %v152, 0.0
  %v161 = vadd.f32 %v153, 0.0
  %v162 = vadd.f32 %v154, 0.0
  %v163 = vadd.f32 %v155, 0.0
  %v164 = vadd.f32 %v156, 0.0
  %v165 = vadd.f32 %v157, 0.0
  %v166 = vadd.f32 %v158, 0.0
  %v167 = vadd.f32 %v159, 0.0
  %v168 = vadd.f32 %v160, 0.0
  %s169 = scalar_lea.vmem %s3, 64
  %v170 = vld [vmem:[%s169] sm:$0xff]
  %v171 = vld [vmem:[%s169 + $0x8] sm:$0xff]
  %v172 = vld [vmem:[%s169 + $0x10] sm:$0xff]
  %v173 = vld [vmem:[%s169 + $0x18] sm:$0xff]
  %v174 = vld [vmem:[%s169 + $0x20] sm:$0xff]
  %v175 = vld [vmem:[%s169 + $0x28] sm:$0xff]
  %v176 = vld [vmem:[%s169 + $0x30] sm:$0xff]
  %v177 = vld [vmem:[%s169 + $0x38] sm:$0xff]
  %s178 = scalar_lea.vmem %s4, 64
  %v179 = vld [vmem:[%s178] sm:$0xff]
  %v180 = vld [vmem:[%s178 + $0x8] sm:$0xff]
  %v181 = vld [vmem:[%s178 + $0x10] sm:$0xff]
  %v182 = vld [vmem:[%s178 + $0x18] sm:$0xff]
  %v183 = vld [vmem:[%s178 + $0x20] sm:$0xff]
  %v184 = vld [vmem:[%s178 + $0x28] sm:$0xff]
  %v185 = vld [vmem:[%s178 + $0x30] sm:$0xff]
  %v186 = vld [vmem:[%s178 + $0x38] sm:$0xff]
  %188 = vset.pattern.permute.xlu0 0
  %189 = vperm.xlu0 %188, %v170
  %v190 = vpop.permute.xlu0 %189
  %193 = vset.pattern.permute.xlu0 0
  %194 = vperm.xlu0 %193, %v171
  %v195 = vpop.permute.xlu0 %194
  %198 = vset.pattern.permute.xlu0 0
  %199 = vperm.xlu0 %198, %v172
  %v200 = vpop.permute.xlu0 %199
  %203 = vset.pattern.permute.xlu0 0
  %204 = vperm.xlu0 %203, %v173
  %v205 = vpop.permute.xlu0 %204
  %208 = vset.pattern.permute.xlu0 0
  %209 = vperm.xlu0 %208, %v174
  %v210 = vpop.permute.xlu0 %209
  %213 = vset.pattern.permute.xlu0 0
  %214 = vperm.xlu0 %213, %v175
  %v215 = vpop.permute.xlu0 %214
  %218 = vset.pattern.permute.xlu0 0
  %219 = vperm.xlu0 %218, %v176
  %v220 = vpop.permute.xlu0 %219
  %223 = vset.pattern.permute.xlu0 0
  %224 = vperm.xlu0 %223, %v177
  %v225 = vpop.permute.xlu0 %224
  %v227 = vsub.f32 %v190, %v78
  %v228 = vsub.f32 %v195, %v78
  %v229 = vsub.f32 %v200, %v78
  %v230 = vsub.f32 %v205, %v78
  %v231 = vsub.f32 %v210, %v78
  %v232 = vsub.f32 %v215, %v78
  %v233 = vsub.f32 %v220, %v78
  %v234 = vsub.f32 %v225, %v78
  %236 = vset.pattern.permute.xlu0 0
  %237 = vperm.xlu0 %236, %v179
  %v238 = vpop.permute.xlu0 %237
  %241 = vset.pattern.permute.xlu0 0
  %242 = vperm.xlu0 %241, %v180
  %v243 = vpop.permute.xlu0 %242
  %246 = vset.pattern.permute.xlu0 0
  %247 = vperm.xlu0 %246, %v181
  %v248 = vpop.permute.xlu0 %247
  %251 = vset.pattern.permute.xlu0 0
  %252 = vperm.xlu0 %251, %v182
  %v253 = vpop.permute.xlu0 %252
  %256 = vset.pattern.permute.xlu0 0
  %257 = vperm.xlu0 %256, %v183
  %v258 = vpop.permute.xlu0 %257
  %261 = vset.pattern.permute.xlu0 0
  %262 = vperm.xlu0 %261, %v184
  %v263 = vpop.permute.xlu0 %262
  %266 = vset.pattern.permute.xlu0 0
  %267 = vperm.xlu0 %266, %v185
  %v268 = vpop.permute.xlu0 %267
  %271 = vset.pattern.permute.xlu0 0
  %272 = vperm.xlu0 %271, %v186
  %v273 = vpop.permute.xlu0 %272
  %v275 = vsub.f32 %v238, %v127
  %v276 = vsub.f32 %v243, %v127
  %v277 = vsub.f32 %v248, %v127
  %v278 = vsub.f32 %v253, %v127
  %v279 = vsub.f32 %v258, %v127
  %v280 = vsub.f32 %v263, %v127
  %v281 = vsub.f32 %v268, %v127
  %v282 = vsub.f32 %v273, %v127
  %v283 = vmul.f32 %v227, %v275
  %v284 = vmul.f32 %v228, %v276
  %v285 = vmul.f32 %v229, %v277
  %v286 = vmul.f32 %v230, %v278
  %v287 = vmul.f32 %v231, %v279
  %v288 = vmul.f32 %v232, %v280
  %v289 = vmul.f32 %v233, %v281
  %v290 = vmul.f32 %v234, %v282
  %v291 = vsub.f32 %v144, %v283
  %v292 = vsub.f32 %v144, %v284
  %v293 = vsub.f32 %v144, %v285
  %v294 = vsub.f32 %v144, %v286
  %v295 = vsub.f32 %v144, %v287
  %v296 = vsub.f32 %v144, %v288
  %v297 = vsub.f32 %v144, %v289
  %v298 = vsub.f32 %v144, %v290
  %v299 = vmax.f32 %v291, 0.0
  %v300 = vmax.f32 %v292, 0.0
  %v301 = vmax.f32 %v293, 0.0
  %v302 = vmax.f32 %v294, 0.0
  %v303 = vmax.f32 %v295, 0.0
  %v304 = vmax.f32 %v296, 0.0
  %v305 = vmax.f32 %v297, 0.0
  %v306 = vmax.f32 %v298, 0.0
  %v307 = vadd.f32 %v161, %v299
  %v308 = vadd.f32 %v162, %v300
  %v309 = vadd.f32 %v163, %v301
  %v310 = vadd.f32 %v164, %v302
  %v311 = vadd.f32 %v165, %v303
  %v312 = vadd.f32 %v166, %v304
  %v313 = vadd.f32 %v167, %v305
  %v314 = vadd.f32 %v168, %v306
  %v315 = vld [vmem:[%s1 + $0x1] sm:$0x1]
  %v316 = vld [vmem:[%s2 + $0x1] sm:$0x1]
  %317 = vset.pattern.permute.xlu0 1
  %318 = vperm.xlu0 %317, %v22
  %v319 = vpop.permute.xlu0 %318
  %321 = vset.pattern.permute.xlu0 1
  %322 = vperm.xlu0 %321, %v23
  %v323 = vpop.permute.xlu0 %322
  %325 = vset.pattern.permute.xlu0 1
  %326 = vperm.xlu0 %325, %v24
  %v327 = vpop.permute.xlu0 %326
  %329 = vset.pattern.permute.xlu0 1
  %330 = vperm.xlu0 %329, %v25
  %v331 = vpop.permute.xlu0 %330
  %333 = vset.pattern.permute.xlu0 1
  %334 = vperm.xlu0 %333, %v26
  %v335 = vpop.permute.xlu0 %334
  %337 = vset.pattern.permute.xlu0 1
  %338 = vperm.xlu0 %337, %v27
  %v339 = vpop.permute.xlu0 %338
  %341 = vset.pattern.permute.xlu0 1
  %342 = vperm.xlu0 %341, %v28
  %v343 = vpop.permute.xlu0 %342
  %345 = vset.pattern.permute.xlu0 1
  %346 = vperm.xlu0 %345, %v29
  %v347 = vpop.permute.xlu0 %346
  %v349 = vperm.slane %v315, 0
  %v350 = vsub.f32 %v319, %v349
  %v351 = vsub.f32 %v323, %v349
  %v352 = vsub.f32 %v327, %v349
  %v353 = vsub.f32 %v331, %v349
  %v354 = vsub.f32 %v335, %v349
  %v355 = vsub.f32 %v339, %v349
  %v356 = vsub.f32 %v343, %v349
  %v357 = vsub.f32 %v347, %v349
  %358 = vset.pattern.permute.xlu0 1
  %359 = vperm.xlu0 %358, %v30
  %v360 = vpop.permute.xlu0 %359
  %362 = vset.pattern.permute.xlu0 1
  %363 = vperm.xlu0 %362, %v31
  %v364 = vpop.permute.xlu0 %363
  %366 = vset.pattern.permute.xlu0 1
  %367 = vperm.xlu0 %366, %v32
  %v368 = vpop.permute.xlu0 %367
  %370 = vset.pattern.permute.xlu0 1
  %371 = vperm.xlu0 %370, %v33
  %v372 = vpop.permute.xlu0 %371
  %374 = vset.pattern.permute.xlu0 1
  %375 = vperm.xlu0 %374, %v34
  %v376 = vpop.permute.xlu0 %375
  %378 = vset.pattern.permute.xlu0 1
  %379 = vperm.xlu0 %378, %v35
  %v380 = vpop.permute.xlu0 %379
  %382 = vset.pattern.permute.xlu0 1
  %383 = vperm.xlu0 %382, %v36
  %v384 = vpop.permute.xlu0 %383
  %386 = vset.pattern.permute.xlu0 1
  %387 = vperm.xlu0 %386, %v37
  %v388 = vpop.permute.xlu0 %387
  %v390 = vperm.slane %v316, 0
  %v391 = vsub.f32 %v360, %v390
  %v392 = vsub.f32 %v364, %v390
  %v393 = vsub.f32 %v368, %v390
  %v394 = vsub.f32 %v372, %v390
  %v395 = vsub.f32 %v376, %v390
  %v396 = vsub.f32 %v380, %v390
  %v397 = vsub.f32 %v384, %v390
  %v398 = vsub.f32 %v388, %v390
  %v399 = vmul.f32 %v350, %v391
  %v400 = vmul.f32 %v351, %v392
  %v401 = vmul.f32 %v352, %v393
  %v402 = vmul.f32 %v353, %v394
  %v403 = vmul.f32 %v354, %v395
  %v404 = vmul.f32 %v355, %v396
  %v405 = vmul.f32 %v356, %v397
  %v406 = vmul.f32 %v357, %v398
  %v407 = vsub.f32 %v144, %v399
  %v408 = vsub.f32 %v144, %v400
  %v409 = vsub.f32 %v144, %v401
  %v410 = vsub.f32 %v144, %v402
  %v411 = vsub.f32 %v144, %v403
  %v412 = vsub.f32 %v144, %v404
  %v413 = vsub.f32 %v144, %v405
  %v414 = vsub.f32 %v144, %v406
  %v415 = vmax.f32 %v407, 0.0
  %v416 = vmax.f32 %v408, 0.0
  %v417 = vmax.f32 %v409, 0.0
  %v418 = vmax.f32 %v410, 0.0
  %v419 = vmax.f32 %v411, 0.0
  %v420 = vmax.f32 %v412, 0.0
  %v421 = vmax.f32 %v413, 0.0
  %v422 = vmax.f32 %v414, 0.0
  %v423 = vadd.f32 %v307, %v415
  %v424 = vadd.f32 %v308, %v416
  %v425 = vadd.f32 %v309, %v417
  %v426 = vadd.f32 %v310, %v418
  %v427 = vadd.f32 %v311, %v419
  %v428 = vadd.f32 %v312, %v420
  %v429 = vadd.f32 %v313, %v421
  %v430 = vadd.f32 %v314, %v422
  %431 = vset.pattern.permute.xlu0 1
  %432 = vperm.xlu0 %431, %v170
  %v433 = vpop.permute.xlu0 %432
  %435 = vset.pattern.permute.xlu0 1
  %436 = vperm.xlu0 %435, %v171
  %v437 = vpop.permute.xlu0 %436
  %439 = vset.pattern.permute.xlu0 1
  %440 = vperm.xlu0 %439, %v172
  %v441 = vpop.permute.xlu0 %440
  %443 = vset.pattern.permute.xlu0 1
  %444 = vperm.xlu0 %443, %v173
  %v445 = vpop.permute.xlu0 %444
  %447 = vset.pattern.permute.xlu0 1
  %448 = vperm.xlu0 %447, %v174
  %v449 = vpop.permute.xlu0 %448
  %451 = vset.pattern.permute.xlu0 1
  %452 = vperm.xlu0 %451, %v175
  %v453 = vpop.permute.xlu0 %452
  %455 = vset.pattern.permute.xlu0 1
  %456 = vperm.xlu0 %455, %v176
  %v457 = vpop.permute.xlu0 %456
  %459 = vset.pattern.permute.xlu0 1
  %460 = vperm.xlu0 %459, %v177
  %v461 = vpop.permute.xlu0 %460
  %v463 = vsub.f32 %v433, %v349
  %v464 = vsub.f32 %v437, %v349
  %v465 = vsub.f32 %v441, %v349
  %v466 = vsub.f32 %v445, %v349
  %v467 = vsub.f32 %v449, %v349
  %v468 = vsub.f32 %v453, %v349
  %v469 = vsub.f32 %v457, %v349
  %v470 = vsub.f32 %v461, %v349
  %471 = vset.pattern.permute.xlu0 1
  %472 = vperm.xlu0 %471, %v179
  %v473 = vpop.permute.xlu0 %472
  %475 = vset.pattern.permute.xlu0 1
  %476 = vperm.xlu0 %475, %v180
  %v477 = vpop.permute.xlu0 %476
  %479 = vset.pattern.permute.xlu0 1
  %480 = vperm.xlu0 %479, %v181
  %v481 = vpop.permute.xlu0 %480
  %483 = vset.pattern.permute.xlu0 1
  %484 = vperm.xlu0 %483, %v182
  %v485 = vpop.permute.xlu0 %484
  %487 = vset.pattern.permute.xlu0 1
  %488 = vperm.xlu0 %487, %v183
  %v489 = vpop.permute.xlu0 %488
  %491 = vset.pattern.permute.xlu0 1
  %492 = vperm.xlu0 %491, %v184
  %v493 = vpop.permute.xlu0 %492
  %495 = vset.pattern.permute.xlu0 1
  %496 = vperm.xlu0 %495, %v185
  %v497 = vpop.permute.xlu0 %496
  %499 = vset.pattern.permute.xlu0 1
  %500 = vperm.xlu0 %499, %v186
  %v501 = vpop.permute.xlu0 %500
  %v503 = vsub.f32 %v473, %v390
  %v504 = vsub.f32 %v477, %v390
  %v505 = vsub.f32 %v481, %v390
  %v506 = vsub.f32 %v485, %v390
  %v507 = vsub.f32 %v489, %v390
  %v508 = vsub.f32 %v493, %v390
  %v509 = vsub.f32 %v497, %v390
  %v510 = vsub.f32 %v501, %v390
  %v511 = vmul.f32 %v463, %v503
  %v512 = vmul.f32 %v464, %v504
  %v513 = vmul.f32 %v465, %v505
  %v514 = vmul.f32 %v466, %v506
  %v515 = vmul.f32 %v467, %v507
  %v516 = vmul.f32 %v468, %v508
  %v517 = vmul.f32 %v469, %v509
  %v518 = vmul.f32 %v470, %v510
  %v519 = vsub.f32 %v144, %v511
  %v520 = vsub.f32 %v144, %v512
  %v521 = vsub.f32 %v144, %v513
  %v522 = vsub.f32 %v144, %v514
  %v523 = vsub.f32 %v144, %v515
  %v524 = vsub.f32 %v144, %v516
  %v525 = vsub.f32 %v144, %v517
  %v526 = vsub.f32 %v144, %v518
  %v527 = vmax.f32 %v519, 0.0
  %v528 = vmax.f32 %v520, 0.0
  %v529 = vmax.f32 %v521, 0.0
  %v530 = vmax.f32 %v522, 0.0
  %v531 = vmax.f32 %v523, 0.0
  %v532 = vmax.f32 %v524, 0.0
  %v533 = vmax.f32 %v525, 0.0
  %v534 = vmax.f32 %v526, 0.0
  %v535 = vadd.f32 %v423, %v527
  %v536 = vadd.f32 %v424, %v528
  %v537 = vadd.f32 %v425, %v529
  %v538 = vadd.f32 %v426, %v530
  %v539 = vadd.f32 %v427, %v531
  %v540 = vadd.f32 %v428, %v532
  %v541 = vadd.f32 %v429, %v533
  %v542 = vadd.f32 %v430, %v534
  %v543 = vld [vmem:[%s1 + $0x2] sm:$0x1]
  %v544 = vld [vmem:[%s2 + $0x2] sm:$0x1]
  %545 = vset.pattern.permute.xlu0 2
  %546 = vperm.xlu0 %545, %v22
  %v547 = vpop.permute.xlu0 %546
  %549 = vset.pattern.permute.xlu0 2
  %550 = vperm.xlu0 %549, %v23
  %v551 = vpop.permute.xlu0 %550
  %553 = vset.pattern.permute.xlu0 2
  %554 = vperm.xlu0 %553, %v24
  %v555 = vpop.permute.xlu0 %554
  %557 = vset.pattern.permute.xlu0 2
  %558 = vperm.xlu0 %557, %v25
  %v559 = vpop.permute.xlu0 %558
  %561 = vset.pattern.permute.xlu0 2
  %562 = vperm.xlu0 %561, %v26
  %v563 = vpop.permute.xlu0 %562
  %565 = vset.pattern.permute.xlu0 2
  %566 = vperm.xlu0 %565, %v27
  %v567 = vpop.permute.xlu0 %566
  %569 = vset.pattern.permute.xlu0 2
  %570 = vperm.xlu0 %569, %v28
  %v571 = vpop.permute.xlu0 %570
  %573 = vset.pattern.permute.xlu0 2
  %574 = vperm.xlu0 %573, %v29
  %v575 = vpop.permute.xlu0 %574
  %v577 = vperm.slane %v543, 0
  %v578 = vsub.f32 %v547, %v577
  %v579 = vsub.f32 %v551, %v577
  %v580 = vsub.f32 %v555, %v577
  %v581 = vsub.f32 %v559, %v577
  %v582 = vsub.f32 %v563, %v577
  %v583 = vsub.f32 %v567, %v577
  %v584 = vsub.f32 %v571, %v577
  %v585 = vsub.f32 %v575, %v577
  %586 = vset.pattern.permute.xlu0 2
  %587 = vperm.xlu0 %586, %v30
  %v588 = vpop.permute.xlu0 %587
  %590 = vset.pattern.permute.xlu0 2
  %591 = vperm.xlu0 %590, %v31
  %v592 = vpop.permute.xlu0 %591
  %594 = vset.pattern.permute.xlu0 2
  %595 = vperm.xlu0 %594, %v32
  %v596 = vpop.permute.xlu0 %595
  %598 = vset.pattern.permute.xlu0 2
  %599 = vperm.xlu0 %598, %v33
  %v600 = vpop.permute.xlu0 %599
  %602 = vset.pattern.permute.xlu0 2
  %603 = vperm.xlu0 %602, %v34
  %v604 = vpop.permute.xlu0 %603
  %606 = vset.pattern.permute.xlu0 2
  %607 = vperm.xlu0 %606, %v35
  %v608 = vpop.permute.xlu0 %607
  %610 = vset.pattern.permute.xlu0 2
  %611 = vperm.xlu0 %610, %v36
  %v612 = vpop.permute.xlu0 %611
  %614 = vset.pattern.permute.xlu0 2
  %615 = vperm.xlu0 %614, %v37
  %v616 = vpop.permute.xlu0 %615
  %v618 = vperm.slane %v544, 0
  %v619 = vsub.f32 %v588, %v618
  %v620 = vsub.f32 %v592, %v618
  %v621 = vsub.f32 %v596, %v618
  %v622 = vsub.f32 %v600, %v618
  %v623 = vsub.f32 %v604, %v618
  %v624 = vsub.f32 %v608, %v618
  %v625 = vsub.f32 %v612, %v618
  %v626 = vsub.f32 %v616, %v618
  %v627 = vmul.f32 %v578, %v619
  %v628 = vmul.f32 %v579, %v620
  %v629 = vmul.f32 %v580, %v621
  %v630 = vmul.f32 %v581, %v622
  %v631 = vmul.f32 %v582, %v623
  %v632 = vmul.f32 %v583, %v624
  %v633 = vmul.f32 %v584, %v625
  %v634 = vmul.f32 %v585, %v626
  %v635 = vsub.f32 %v144, %v627
  %v636 = vsub.f32 %v144, %v628
  %v637 = vsub.f32 %v144, %v629
  %v638 = vsub.f32 %v144, %v630
  %v639 = vsub.f32 %v144, %v631
  %v640 = vsub.f32 %v144, %v632
  %v641 = vsub.f32 %v144, %v633
  %v642 = vsub.f32 %v144, %v634
  %v643 = vmax.f32 %v635, 0.0
  %v644 = vmax.f32 %v636, 0.0
  %v645 = vmax.f32 %v637, 0.0
  %v646 = vmax.f32 %v638, 0.0
  %v647 = vmax.f32 %v639, 0.0
  %v648 = vmax.f32 %v640, 0.0
  %v649 = vmax.f32 %v641, 0.0
  %v650 = vmax.f32 %v642, 0.0
  %v651 = vadd.f32 %v535, %v643
  %v652 = vadd.f32 %v536, %v644
  %v653 = vadd.f32 %v537, %v645
  %v654 = vadd.f32 %v538, %v646
  %v655 = vadd.f32 %v539, %v647
  %v656 = vadd.f32 %v540, %v648
  %v657 = vadd.f32 %v541, %v649
  %v658 = vadd.f32 %v542, %v650
  %659 = vset.pattern.permute.xlu0 2
  %660 = vperm.xlu0 %659, %v170
  %v661 = vpop.permute.xlu0 %660
  %663 = vset.pattern.permute.xlu0 2
  %664 = vperm.xlu0 %663, %v171
  %v665 = vpop.permute.xlu0 %664
  %667 = vset.pattern.permute.xlu0 2
  %668 = vperm.xlu0 %667, %v172
  %v669 = vpop.permute.xlu0 %668
  %671 = vset.pattern.permute.xlu0 2
  %672 = vperm.xlu0 %671, %v173
  %v673 = vpop.permute.xlu0 %672
  %675 = vset.pattern.permute.xlu0 2
  %676 = vperm.xlu0 %675, %v174
  %v677 = vpop.permute.xlu0 %676
  %679 = vset.pattern.permute.xlu0 2
  %680 = vperm.xlu0 %679, %v175
  %v681 = vpop.permute.xlu0 %680
  %683 = vset.pattern.permute.xlu0 2
  %684 = vperm.xlu0 %683, %v176
  %v685 = vpop.permute.xlu0 %684
  %687 = vset.pattern.permute.xlu0 2
  %688 = vperm.xlu0 %687, %v177
  %v689 = vpop.permute.xlu0 %688
  %v691 = vsub.f32 %v661, %v577
  %v692 = vsub.f32 %v665, %v577
  %v693 = vsub.f32 %v669, %v577
  %v694 = vsub.f32 %v673, %v577
  %v695 = vsub.f32 %v677, %v577
  %v696 = vsub.f32 %v681, %v577
  %v697 = vsub.f32 %v685, %v577
  %v698 = vsub.f32 %v689, %v577
  %699 = vset.pattern.permute.xlu0 2
  %700 = vperm.xlu0 %699, %v179
  %v701 = vpop.permute.xlu0 %700
  %703 = vset.pattern.permute.xlu0 2
  %704 = vperm.xlu0 %703, %v180
  %v705 = vpop.permute.xlu0 %704
  %707 = vset.pattern.permute.xlu0 2
  %708 = vperm.xlu0 %707, %v181
  %v709 = vpop.permute.xlu0 %708
  %711 = vset.pattern.permute.xlu0 2
  %712 = vperm.xlu0 %711, %v182
  %v713 = vpop.permute.xlu0 %712
  %715 = vset.pattern.permute.xlu0 2
  %716 = vperm.xlu0 %715, %v183
  %v717 = vpop.permute.xlu0 %716
  %719 = vset.pattern.permute.xlu0 2
  %720 = vperm.xlu0 %719, %v184
  %v721 = vpop.permute.xlu0 %720
  %723 = vset.pattern.permute.xlu0 2
  %724 = vperm.xlu0 %723, %v185
  %v725 = vpop.permute.xlu0 %724
  %727 = vset.pattern.permute.xlu0 2
  %728 = vperm.xlu0 %727, %v186
  %v729 = vpop.permute.xlu0 %728
  %v731 = vsub.f32 %v701, %v618
  %v732 = vsub.f32 %v705, %v618
  %v733 = vsub.f32 %v709, %v618
  %v734 = vsub.f32 %v713, %v618
  %v735 = vsub.f32 %v717, %v618
  %v736 = vsub.f32 %v721, %v618
  %v737 = vsub.f32 %v725, %v618
  %v738 = vsub.f32 %v729, %v618
  %v739 = vmul.f32 %v691, %v731
  %v740 = vmul.f32 %v692, %v732
  %v741 = vmul.f32 %v693, %v733
  %v742 = vmul.f32 %v694, %v734
  %v743 = vmul.f32 %v695, %v735
  %v744 = vmul.f32 %v696, %v736
  %v745 = vmul.f32 %v697, %v737
  %v746 = vmul.f32 %v698, %v738
  %v747 = vsub.f32 %v144, %v739
  %v748 = vsub.f32 %v144, %v740
  %v749 = vsub.f32 %v144, %v741
  %v750 = vsub.f32 %v144, %v742
  %v751 = vsub.f32 %v144, %v743
  %v752 = vsub.f32 %v144, %v744
  %v753 = vsub.f32 %v144, %v745
  %v754 = vsub.f32 %v144, %v746
  %v755 = vmax.f32 %v747, 0.0
  %v756 = vmax.f32 %v748, 0.0
  %v757 = vmax.f32 %v749, 0.0
  %v758 = vmax.f32 %v750, 0.0
  %v759 = vmax.f32 %v751, 0.0
  %v760 = vmax.f32 %v752, 0.0
  %v761 = vmax.f32 %v753, 0.0
  %v762 = vmax.f32 %v754, 0.0
  %v763 = vadd.f32 %v651, %v755
  %v764 = vadd.f32 %v652, %v756
  %v765 = vadd.f32 %v653, %v757
  %v766 = vadd.f32 %v654, %v758
  %v767 = vadd.f32 %v655, %v759
  %v768 = vadd.f32 %v656, %v760
  %v769 = vadd.f32 %v657, %v761
  %v770 = vadd.f32 %v658, %v762
  %v771 = vld [vmem:[%s1 + $0x3] sm:$0x1]
  %v772 = vld [vmem:[%s2 + $0x3] sm:$0x1]
  %773 = vset.pattern.permute.xlu0 3
  %774 = vperm.xlu0 %773, %v22
  %v775 = vpop.permute.xlu0 %774
  %777 = vset.pattern.permute.xlu0 3
  %778 = vperm.xlu0 %777, %v23
  %v779 = vpop.permute.xlu0 %778
  %781 = vset.pattern.permute.xlu0 3
  %782 = vperm.xlu0 %781, %v24
  %v783 = vpop.permute.xlu0 %782
  %785 = vset.pattern.permute.xlu0 3
  %786 = vperm.xlu0 %785, %v25
  %v787 = vpop.permute.xlu0 %786
  %789 = vset.pattern.permute.xlu0 3
  %790 = vperm.xlu0 %789, %v26
  %v791 = vpop.permute.xlu0 %790
  %793 = vset.pattern.permute.xlu0 3
  %794 = vperm.xlu0 %793, %v27
  %v795 = vpop.permute.xlu0 %794
  %797 = vset.pattern.permute.xlu0 3
  %798 = vperm.xlu0 %797, %v28
  %v799 = vpop.permute.xlu0 %798
  %801 = vset.pattern.permute.xlu0 3
  %802 = vperm.xlu0 %801, %v29
  %v803 = vpop.permute.xlu0 %802
  %v805 = vperm.slane %v771, 0
  %v806 = vsub.f32 %v775, %v805
  %v807 = vsub.f32 %v779, %v805
  %v808 = vsub.f32 %v783, %v805
  %v809 = vsub.f32 %v787, %v805
  %v810 = vsub.f32 %v791, %v805
  %v811 = vsub.f32 %v795, %v805
  %v812 = vsub.f32 %v799, %v805
  %v813 = vsub.f32 %v803, %v805
  %814 = vset.pattern.permute.xlu0 3
  %815 = vperm.xlu0 %814, %v30
  %v816 = vpop.permute.xlu0 %815
  %818 = vset.pattern.permute.xlu0 3
  %819 = vperm.xlu0 %818, %v31
  %v820 = vpop.permute.xlu0 %819
  %822 = vset.pattern.permute.xlu0 3
  %823 = vperm.xlu0 %822, %v32
  %v824 = vpop.permute.xlu0 %823
  %826 = vset.pattern.permute.xlu0 3
  %827 = vperm.xlu0 %826, %v33
  %v828 = vpop.permute.xlu0 %827
  %830 = vset.pattern.permute.xlu0 3
  %831 = vperm.xlu0 %830, %v34
  %v832 = vpop.permute.xlu0 %831
  %834 = vset.pattern.permute.xlu0 3
  %835 = vperm.xlu0 %834, %v35
  %v836 = vpop.permute.xlu0 %835
  %838 = vset.pattern.permute.xlu0 3
  %839 = vperm.xlu0 %838, %v36
  %v840 = vpop.permute.xlu0 %839
  %842 = vset.pattern.permute.xlu0 3
  %843 = vperm.xlu0 %842, %v37
  %v844 = vpop.permute.xlu0 %843
  %v846 = vperm.slane %v772, 0
  %v847 = vsub.f32 %v816, %v846
  %v848 = vsub.f32 %v820, %v846
  %v849 = vsub.f32 %v824, %v846
  %v850 = vsub.f32 %v828, %v846
  %v851 = vsub.f32 %v832, %v846
  %v852 = vsub.f32 %v836, %v846
  %v853 = vsub.f32 %v840, %v846
  %v854 = vsub.f32 %v844, %v846
  %v855 = vmul.f32 %v806, %v847
  %v856 = vmul.f32 %v807, %v848
  %v857 = vmul.f32 %v808, %v849
  %v858 = vmul.f32 %v809, %v850
  %v859 = vmul.f32 %v810, %v851
  %v860 = vmul.f32 %v811, %v852
  %v861 = vmul.f32 %v812, %v853
  %v862 = vmul.f32 %v813, %v854
  %v863 = vsub.f32 %v144, %v855
  %v864 = vsub.f32 %v144, %v856
  %v865 = vsub.f32 %v144, %v857
  %v866 = vsub.f32 %v144, %v858
  %v867 = vsub.f32 %v144, %v859
  %v868 = vsub.f32 %v144, %v860
  %v869 = vsub.f32 %v144, %v861
  %v870 = vsub.f32 %v144, %v862
  %v871 = vmax.f32 %v863, 0.0
  %v872 = vmax.f32 %v864, 0.0
  %v873 = vmax.f32 %v865, 0.0
  %v874 = vmax.f32 %v866, 0.0
  %v875 = vmax.f32 %v867, 0.0
  %v876 = vmax.f32 %v868, 0.0
  %v877 = vmax.f32 %v869, 0.0
  %v878 = vmax.f32 %v870, 0.0
  %v879 = vadd.f32 %v763, %v871
  %v880 = vadd.f32 %v764, %v872
  %v881 = vadd.f32 %v765, %v873
  %v882 = vadd.f32 %v766, %v874
  %v883 = vadd.f32 %v767, %v875
  %v884 = vadd.f32 %v768, %v876
  %v885 = vadd.f32 %v769, %v877
  %v886 = vadd.f32 %v770, %v878
  %887 = vset.pattern.permute.xlu0 3
  %888 = vperm.xlu0 %887, %v170
  %v889 = vpop.permute.xlu0 %888
  %891 = vset.pattern.permute.xlu0 3
  %892 = vperm.xlu0 %891, %v171
  %v893 = vpop.permute.xlu0 %892
  %895 = vset.pattern.permute.xlu0 3
  %896 = vperm.xlu0 %895, %v172
  %v897 = vpop.permute.xlu0 %896
  %899 = vset.pattern.permute.xlu0 3
  %900 = vperm.xlu0 %899, %v173
  %v901 = vpop.permute.xlu0 %900
  %903 = vset.pattern.permute.xlu0 3
  %904 = vperm.xlu0 %903, %v174
  %v905 = vpop.permute.xlu0 %904
  %907 = vset.pattern.permute.xlu0 3
  %908 = vperm.xlu0 %907, %v175
  %v909 = vpop.permute.xlu0 %908
  %911 = vset.pattern.permute.xlu0 3
  %912 = vperm.xlu0 %911, %v176
  %v913 = vpop.permute.xlu0 %912
  %915 = vset.pattern.permute.xlu0 3
  %916 = vperm.xlu0 %915, %v177
  %v917 = vpop.permute.xlu0 %916
  %v919 = vsub.f32 %v889, %v805
  %v920 = vsub.f32 %v893, %v805
  %v921 = vsub.f32 %v897, %v805
  %v922 = vsub.f32 %v901, %v805
  %v923 = vsub.f32 %v905, %v805
  %v924 = vsub.f32 %v909, %v805
  %v925 = vsub.f32 %v913, %v805
  %v926 = vsub.f32 %v917, %v805
  %927 = vset.pattern.permute.xlu0 3
  %928 = vperm.xlu0 %927, %v179
  %v929 = vpop.permute.xlu0 %928
  %931 = vset.pattern.permute.xlu0 3
  %932 = vperm.xlu0 %931, %v180
  %v933 = vpop.permute.xlu0 %932
  %935 = vset.pattern.permute.xlu0 3
  %936 = vperm.xlu0 %935, %v181
  %v937 = vpop.permute.xlu0 %936
  %939 = vset.pattern.permute.xlu0 3
  %940 = vperm.xlu0 %939, %v182
  %v941 = vpop.permute.xlu0 %940
  %943 = vset.pattern.permute.xlu0 3
  %944 = vperm.xlu0 %943, %v183
  %v945 = vpop.permute.xlu0 %944
  %947 = vset.pattern.permute.xlu0 3
  %948 = vperm.xlu0 %947, %v184
  %v949 = vpop.permute.xlu0 %948
  %951 = vset.pattern.permute.xlu0 3
  %952 = vperm.xlu0 %951, %v185
  %v953 = vpop.permute.xlu0 %952
  %955 = vset.pattern.permute.xlu0 3
  %956 = vperm.xlu0 %955, %v186
  %v957 = vpop.permute.xlu0 %956
  %v959 = vsub.f32 %v929, %v846
  %v960 = vsub.f32 %v933, %v846
  %v961 = vsub.f32 %v937, %v846
  %v962 = vsub.f32 %v941, %v846
  %v963 = vsub.f32 %v945, %v846
  %v964 = vsub.f32 %v949, %v846
  %v965 = vsub.f32 %v953, %v846
  %v966 = vsub.f32 %v957, %v846
  %v967 = vmul.f32 %v919, %v959
  %v968 = vmul.f32 %v920, %v960
  %v969 = vmul.f32 %v921, %v961
  %v970 = vmul.f32 %v922, %v962
  %v971 = vmul.f32 %v923, %v963
  %v972 = vmul.f32 %v924, %v964
  %v973 = vmul.f32 %v925, %v965
  %v974 = vmul.f32 %v926, %v966
  %v975 = vsub.f32 %v144, %v967
  %v976 = vsub.f32 %v144, %v968
  %v977 = vsub.f32 %v144, %v969
  %v978 = vsub.f32 %v144, %v970
  %v979 = vsub.f32 %v144, %v971
  %v980 = vsub.f32 %v144, %v972
  %v981 = vsub.f32 %v144, %v973
  %v982 = vsub.f32 %v144, %v974
  %v983 = vmax.f32 %v975, 0.0
  %v984 = vmax.f32 %v976, 0.0
  %v985 = vmax.f32 %v977, 0.0
  %v986 = vmax.f32 %v978, 0.0
  %v987 = vmax.f32 %v979, 0.0
  %v988 = vmax.f32 %v980, 0.0
  %v989 = vmax.f32 %v981, 0.0
  %v990 = vmax.f32 %v982, 0.0
  %v991 = vadd.f32 %v879, %v983
  %v992 = vadd.f32 %v880, %v984
  %v993 = vadd.f32 %v881, %v985
  %v994 = vadd.f32 %v882, %v986
  %v995 = vadd.f32 %v883, %v987
  %v996 = vadd.f32 %v884, %v988
  %v997 = vadd.f32 %v885, %v989
  %v998 = vadd.f32 %v886, %v990
  %v999 = vadd.f32 %v991, %v992
  %v1000 = vadd.f32 %v999, %v993
  %v1001 = vadd.f32 %v1000, %v994
  %v1002 = vadd.f32 %v1001, %v995
  %v1003 = vadd.f32 %v1002, %v996
  %v1004 = vadd.f32 %v1003, %v997
  %v1005 = vadd.f32 %v1004, %v998
  %1006 = vst [vmem:[%s5] sm:$0xff] %v1005
  // Predicated region
  $region18: #{pairwise_max_margin_hinge_loss.1} parent=0 // pred_check
    _
  $region19: #{pairwise_max_margin_hinge_loss.1} parent=0 // pred_check_branch
    %1008 = sbr.rel (0) target = $region21
  $region20: #{pairwise_max_margin_hinge_loss.1} parent=0 // pred_region
    _
  $region21: #{pairwise_max_margin_hinge_loss.1} parent=0 // pred_fallthru
    _
  // Predicated region
  $region22: #{pairwise_max_margin_hinge_loss.1} parent=0 // pred_check
    _
  $region23: #{pairwise_max_margin_hinge_loss.1} parent=0 // pred_check_branch
    %1010 = sbr.rel (0) target = $region25
  $region24: #{pairwise_max_margin_hinge_loss.1} parent=0 // pred_region
    _
  $region25: #{pairwise_max_margin_hinge_loss.1} parent=0 // pred_fallthru
    _

</llo_original>
